<compile_context>
chip_gen: v5e
topology: v5e:2x2
jax: 0.10.0
libtpu: 0.0.40
codegen_flags: <defaults>
</compile_context>

<pallas_src>
import functools

import numpy as np

import jax
import jax.numpy as jnp
from jax.experimental import pallas as pl
from jax.experimental.pallas import tpu as pltpu

NEG_SLOPE = 0.01      # F.leaky_relu default slope
BN_EPS = 1e-5         # nn.BatchNorm2d default eps
NORM_EPS = 1e-6       # the +1e-06 in the reference forward
ADD_PAIRS = (0, 3, 4, 7)   # conv pairs whose bnA residual is actually added back
SUBLANE = 8


def _vmem_spec():
    return pl.BlockSpec(memory_space=pltpu.MemorySpace.VMEM)


# --------------------------------------------------------------------------
# roll-direction probe (guards against the rotate-direction convention)
# --------------------------------------------------------------------------
def _probe_roll_direction():
    """True if pltpu.roll matches jnp.roll (result[i] = x[i - shift])."""
    def k(x_ref, o_ref):
        o_ref[...] = pltpu.roll(x_ref[...], 1, axis=1)

    x = (jnp.arange(128, dtype=jnp.float32).reshape(1, 128)
         * jnp.ones((8, 1), jnp.float32))
    out = pl.pallas_call(
        k,
        out_shape=jax.ShapeDtypeStruct((8, 128), jnp.float32),
        in_specs=[_vmem_spec()],
        out_specs=_vmem_spec(),
    )(x)
    return bool(jax.device_get(out)[0, 1] == 0.0)


# --------------------------------------------------------------------------
# stage configuration
# --------------------------------------------------------------------------
def _stage_configs(N, H0, W0):
    specs = [
        (16, H0, W0, "up", 16),          # tconv_up_1_0 -> tconv_up_1 (2x2, s=2)
        (16, 2 * H0, 2 * W0, "1x1", 8),  # tconv3_0 -> tconv3
        (8, 2 * H0, 2 * W0, "1x1", 4),   # tconv2_0 -> tconv2
        (4, 2 * H0, 2 * W0, "up", 4),    # tconv_up_0_0 -> tconv_up_0 (2x2, s=2)
        (4, 4 * H0, 4 * W0, "1x1", 2),   # tconv1_0 -> tconv1
        (2, 4 * H0, 4 * W0, "1x1", 1),   # tconv0_0 -> tconv0
    ]
    cfgs = []
    for C, H, W, epi, C_out in specs:
        Mp = N * (H + 2) * (W + 2)
        L = ((Mp + 127) // 128) * 128
        Wp = W + 2
        # roll-based-conv safety (see review): interior flat indices span
        # [Wp+1, Mp-Wp-2] and tap offsets span [-(Wp+1), +(Wp+1)], so the
        # circular wrap of pltpu.roll must never feed an interior pixel.
        assert (Wp + 1) - (Wp + 1) >= 0
        assert (Mp - Wp - 2) + (Wp + 1) <= L - 1
        cfgs.append(dict(N=N, C=C, H=H, W=W, epi=epi, C_out=C_out,
                         Mp=Mp, L=L, Wp=Wp,
                         Cp=max(C, SUBLANE), Cp_out=max(C_out, SUBLANE)))
    return cfgs


# --------------------------------------------------------------------------
# the single fused whole-network kernel
# --------------------------------------------------------------------------
def _build_kernel(cfgs, roll_like_jnp):
    refs_per_stage = [10 if c["epi"] == "up" else 9 for c in cfgs]

    def kernel(*refs):
        o_ref = refs[-1]
        x = refs[0][...]                       # (Cp0, L0) lane-dense activation
        pos = 1

        for si, cfg in enumerate(cfgs):
            nr = refs_per_stage[si]
            (w_ref, b_ref, g_ref, bt_ref, gA_ref, bA_ref, m_ref,
             we_ref, bp_ref, *rest) = refs[pos:pos + nr]
            pos += nr

            Cp, L, Wp = cfg["Cp"], cfg["L"], cfg["Wp"]
            inv_m = 1.0 / float(cfg["N"] * cfg["H"] * cfg["W"])
            # hoisted: one broadcast of the interior-pixel mask per stage
            maskC = jnp.broadcast_to(m_ref[...], (Cp, L))

            def shifted(v, s):
                # y[:, m] = v[:, m + s] (circular; wrap lanes are masked later)
                if s == 0:
                    return v
                amt = ((-s) % L) if roll_like_jnp else (s % L)
                return pltpu.roll(v, amt, axis=1)

            def im2col(v):
                # (Cp, L) -> (9*Cp, L); row block t = kh*3+kw holds
                # v shifted by (kh-1)*Wp + (kw-1).  4 rolls total.
                row = jnp.concatenate([shifted(v, -1), v, shifted(v, 1)],
                                      axis=0)                       # (3Cp, L)
                return jnp.concatenate(
                    [shifted(row, -Wp), row, shifted(row, Wp)], axis=0)

            def conv_block(xin, idx):
                # ConvTranspose2d(C,C,3,pad=1) == conv with flipped weights,
                # realized as ONE (Cp, 9Cp) x (9Cp, L) MXU dot, then
                # leaky_relu -> x*(||x||+1e-6) -> BatchNorm folded into a
                # single affine (a, c) applied by the caller.
                col = im2col(xin)
                y = (jnp.dot(w_ref[idx], col,
                             preferred_element_type=jnp.float32) + b_ref[idx])
                y = jnp.maximum(y, NEG_SLOPE * y)          # leaky_relu(0.01)
                ym = y * maskC                             # protect reductions
                s1 = jnp.sum(ym, axis=1, keepdims=True)    # (Cp, 1)
                s2 = jnp.sum(ym * ym, axis=1, keepdims=True)
                s = jnp.sqrt(jnp.sum(s2)) + NORM_EPS       # torch.norm + 1e-6
                mean = s1 * inv_m
                var = jnp.maximum(s2 * inv_m - mean * mean, 0.0)
                # BN of z = s*ym:  a*ym + c  with
                a = g_ref[idx] * s * jax.lax.rsqrt((s * s) * var + BN_EPS)
                c = bt_ref[idx] - a * mean
                return ym, a, c

            for p in range(8):
                if p in ADD_PAIRS:
                    # live bnA_p (bnA1/2/5/6 results are dead in the reference)
                    s1 = jnp.sum(x, axis=1, keepdims=True)
                    s2 = jnp.sum(x * x, axis=1, keepdims=True)
                    meanA = s1 * inv_m
                    varA = jnp.maximum(s2 * inv_m - meanA * meanA, 0.0)
                    aA = gA_ref[p] * jax.lax.rsqrt(varA + BN_EPS)
                    cA = bA_ref[p] - aA * meanA
                    x_in = x
                ym, a, c = conv_block(x, 2 * p)
                x = (a * ym + c) * maskC
                ym, a, c = conv_block(x, 2 * p + 1)
                if p in ADD_PAIRS:
                    # residual add fused under the same output mask
                    x = (a * ym + c + aA * x_in + cA) * maskC
                else:
                    x = (a * ym + c) * maskC

            if cfg["epi"] == "1x1":
                # ConvTranspose2d(C, C_out, 1): same grid / lane layout
                x = (jnp.dot(we_ref[...], x,
                             preferred_element_type=jnp.float32)
                     + bp_ref[...])
            else:
                # ConvTranspose2d(C, C_out, 2, stride=2): 4 slabs scattered
                # into the next stage's lane layout via constant 0/1
                # permutation matrices (all in VMEM, no HBM round trip).
                p_ref = rest[0]
                acc = bp_ref[...]                          # masked bias plane
                for k in range(4):
                    slab = jnp.dot(we_ref[k], x,
                                   preferred_element_type=jnp.float32)
                    acc = acc + jnp.dot(slab, p_ref[k],
                                        preferred_element_type=jnp.float32)
                x = acc

        o_ref[...] = x

    return kernel


# --------------------------------------------------------------------------
# layout glue (only at the network boundary)
# --------------------------------------------------------------------------
def _nchw_to_lanes(x, cfg):
    C, Cp, H, W, L = cfg["C"], cfg["Cp"], cfg["H"], cfg["W"], cfg["L"]
    N = x.shape[0]
    xp = jnp.pad(jnp.transpose(x, (1, 0, 2, 3)),
                 ((0, Cp - C), (0, 0), (1, 1), (1, 1)))
    xp = xp.reshape(Cp, N * (H + 2) * (W + 2))
    return jnp.pad(xp, ((0, 0), (0, L - xp.shape[1])))


def _lanes_to_nchw(x, cfg):
    N, H, W, C_out, Mp = cfg["N"], cfg["H"], cfg["W"], cfg["C_out"], cfg["Mp"]
    y = x[:C_out, :Mp].reshape(C_out, N, H + 2, W + 2)[:, :, 1:H + 1, 1:W + 1]
    return jnp.transpose(y, (1, 0, 2, 3))


# --------------------------------------------------------------------------
# full DecodeNet forward: ONE pallas_call
# --------------------------------------------------------------------------
def decode_net(x_nchw, flat_params, *, cfgs, roll_like_jnp):
    c_first, c_last = cfgs[0], cfgs[-1]
    x = _nchw_to_lanes(x_nchw.astype(jnp.float32), c_first)
    kernel = _build_kernel(cfgs, roll_like_jnp)
    n_in = 1 + len(flat_params)
    out = pl.pallas_call(
        kernel,
        out_shape=jax.ShapeDtypeStruct((c_last["Cp_out"], c_last["L"]),
                                       jnp.float32),
        in_specs=[_vmem_spec()] * n_in,
        out_specs=_vmem_spec(),
    )(x, *flat_params)
    return _lanes_to_nchw(out, c_last)


# --------------------------------------------------------------------------
# parameter init (PyTorch-style layouts)
# --------------------------------------------------------------------------
def _init_tconv(key, cin, cout, k):
    k1, k2 = jax.random.split(key)
    scale = 1.0 / float((cin * k * k) ** 0.5)
    w = jax.random.uniform(k1, (cin, cout, k, k), jnp.float32, -scale, scale)
    b = jax.random.uniform(k2, (cout,), jnp.float32, -scale, scale)
    return w, b


def _init_bn(key, c):
    k1, k2 = jax.random.split(key)
    gamma = (1.0 + 0.1 * jax.random.normal(k1, (c,))).astype(jnp.float32)
    beta = (0.1 * jax.random.normal(k2, (c,))).astype(jnp.float32)
    return gamma, beta


def init_decode_params(key, cfgs):
    stages = []
    for cfg in cfgs:
        C, C_out = cfg["C"], cfg["C_out"]
        kk = 2 if cfg["epi"] == "up" else 1
        keys = jax.random.split(key, 42)
        key = keys[0]
        tconvs = [_init_tconv(keys[1 + i], C, C, 3) for i in range(16)]
        bns = [_init_bn(keys[17 + i], C) for i in range(16)]
        bnAs = [_init_bn(keys[33 + i], C) for i in range(8)]
        epi = _init_tconv(keys[41], C, C_out, kk)
        stages.append(dict(tconvs=tconvs, bns=bns, bnAs=bnAs, epi=epi))
    return stages


# --------------------------------------------------------------------------
# packing into kernel-ready arrays (done once, outside jit)
# --------------------------------------------------------------------------
def _interior_mask(cfg):
    N, H, W, Mp, L = cfg["N"], cfg["H"], cfg["W"], cfg["Mp"], cfg["L"]
    m = jnp.pad(jnp.ones((1, N, H, W), jnp.float32),
                ((0, 0), (0, 0), (1, 1), (1, 1))).reshape(1, Mp)
    return jnp.pad(m, ((0, 0), (0, L - Mp)))


def _upsample_perm(cfg, cfg_next):
    """(4, L_in, L_next) 0/1 matrices scattering each 2x2 slab into the
    next stage's zero-padded, flattened lane layout."""
    N, H, W, L_in = cfg["N"], cfg["H"], cfg["W"], cfg["L"]
    Hn, Wn, L_next = cfg_next["H"], cfg_next["W"], cfg_next["L"]
    assert Hn == 2 * H and Wn == 2 * W
    P = np.zeros((4, L_in, L_next), np.float32)
    for n in range(N):
        for h in range(H):
            for w in range(W):
                src = n * (H + 2) * (W + 2) + (h + 1) * (W + 2) + (w + 1)
                for kh in range(2):
                    for kw in range(2):
                        dst = (n * (Hn + 2) * (Wn + 2)
                               + (2 * h + kh + 1) * (Wn + 2)
                               + (2 * w + kw + 1))
                        P[kh * 2 + kw, src, dst] = 1.0
    return jnp.asarray(P)


def _pack_stage(raw, cfg, cfg_next):
    C, Cp = cfg["C"], cfg["Cp"]
    C_out, Cp_out = cfg["C_out"], cfg["Cp_out"]

    def pad_ch(v):                      # (C,) -> (Cp, 1), zero-padded channels
        return jnp.pad(v, (0, Cp - C)).reshape(Cp, 1)

    # ConvTranspose2d(3x3, pad=1) == conv with spatially flipped weights,
    # pre-stacked as (Cp, 9*Cp) im2col matrices (zero rows/cols for padding).
    wmats, biases = [], []
    for wt, bb in raw["tconvs"]:
        flipped = wt[:, :, ::-1, ::-1]                    # (ci, co, kh, kw)
        core = jnp.transpose(flipped, (1, 2, 3, 0))       # (co, kh, kw, ci)
        core = jnp.pad(core, ((0, Cp - C), (0, 0), (0, 0), (0, Cp - C)))
        wmats.append(core.reshape(Cp, 9 * Cp))
        biases.append(pad_ch(bb))
    w = jnp.stack(wmats)                                  # (16, Cp, 9*Cp)
    b = jnp.stack(biases)                                 # (16, Cp, 1)
    gamma = jnp.stack([pad_ch(g) for g, _ in raw["bns"]])
    beta = jnp.stack([pad_ch(bb) for _, bb in raw["bns"]])
    gA = jnp.stack([pad_ch(g) for g, _ in raw["bnAs"]])
    bA = jnp.stack([pad_ch(bb) for _, bb in raw["bnAs"]])

    mask = _interior_mask(cfg)                            # (1, L)

    ew, eb = raw["epi"]
    eb_p = jnp.pad(eb, (0, Cp_out - C_out)).reshape(Cp_out, 1)
    if cfg["epi"] == "1x1":
        we = jnp.pad(jnp.transpose(ew[:, :, 0, 0]),
                     ((0, Cp_out - C_out), (0, Cp - C)))  # (Cp_out, Cp)
        bias_plane = eb_p * mask                          # (Cp_out, L)
        return (w, b, gamma, beta, gA, bA, mask, we, bias_plane)
    we = jnp.pad(jnp.transpose(ew, (2, 3, 1, 0)).reshape(4, C_out, C),
                 ((0, 0), (0, Cp_out - C_out), (0, Cp - C)))
    bias_plane = eb_p * _interior_mask(cfg_next)          # (Cp_out, L_next)
    P = _upsample_perm(cfg, cfg_next)                     # (4, L, L_next)
    return (w, b, gamma, beta, gA, bA, mask, we, bias_plane, P)


# --------------------------------------------------------------------------
# main
# --------------------------------------------------------------------------
if __name__ == "__main__":
    key = jax.random.PRNGKey(0)
    N, H0, W0 = 2, 4, 4
    cfgs = _stage_configs(N, H0, W0)

    pkey, xkey = jax.random.split(key)
    raw_params = init_decode_params(pkey, cfgs)
    flat_params = []
    for i, (raw, cfg) in enumerate(zip(raw_params, cfgs)):
        nxt = cfgs[i + 1] if i + 1 < len(cfgs) else None
        flat_params.extend(_pack_stage(raw, cfg, nxt))
    flat_params = tuple(flat_params)

    roll_like_jnp = _probe_roll_direction()

    fwd = jax.jit(functools.partial(decode_net, cfgs=cfgs,
                                    roll_like_jnp=roll_like_jnp))

    x = jax.random.normal(xkey, (N, 16, H0, W0), dtype=jnp.float32)
    out = fwd(x, flat_params)
    jax.block_until_ready(out)

    assert out.shape == (N, 1, 4 * H0, 4 * W0), out.shape
    assert bool(jnp.all(jnp.isfinite(out)))
    print("KERNEL_OK")
</pallas_src>

<mosaic_0001>
module attributes {stable_mosaic.version = 11 : i64} {
  func.func @k(%arg0: memref<8x128xf32, #tpu.memory_space<vmem>>, %arg1: memref<8x128xf32, #tpu.memory_space<vmem>>) attributes {dimension_semantics = [], scalar_prefetch = 0 : i64, scratch_operands = 0 : i64, tpu.core_type = #tpu.core_type<tc>} {
    %c0 = arith.constant 0 : index
    %c0_0 = arith.constant 0 : index
    %0 = vector.load %arg0[%c0, %c0_0] : memref<8x128xf32, #tpu.memory_space<vmem>>, vector<8x128xf32>
    %c1_i32 = arith.constant 1 : i32
    %1 = tpu.dynamic_rotate %0 by %c1_i32 dim 1 : vector<8x128xf32>, i32 -> vector<8x128xf32>
    %c0_1 = arith.constant 0 : index
    %c0_2 = arith.constant 0 : index
    %2 = vector.load %arg1[%c0_1, %c0_2] : memref<8x128xf32, #tpu.memory_space<vmem>>, vector<8x128xf32>
    tpu.vector_store %arg1[%c0_1, %c0_2], %1 {strides = array<i32>} : memref<8x128xf32, #tpu.memory_space<vmem>>, vector<8x128xf32>,
    return
  }
}

</mosaic_0001>

<llo_original>
// kernel: tpu_custom_call.1
$region0: #{tpu_custom_call.1}
  #allocation0 [shape = 'u32[]', space=smem, size = 0x4, offset = 0x4, fixed_abs, tag = 'smem constant byte address 0x4 - core index']
  #allocation1 [shape = 'u32[72,128]{1,0:T(1,128)}', space=vmem, size = 0x9000, scoped, tag = 'internal scratch']
  %s0 = inlined_call_operand.hbm [shape: f32[8,128], index: 0, kind: input, shape index: {}]
  %s1 = inlined_call_operand.hbm [shape: f32[8,128], index: 1, kind: output, shape index: {}]
  %s2 = sld [smem:[#allocation0]]
  $region18: #{tpu_custom_call.1} parent=0
    _
  %s4 = ssub.s32 1, %s2
  %s5 = scalar_select 0, %s4, %s2
  $region1: #{tpu_custom_call.1} parent=0
    #allocation2 [shape = 'u8[4096]{0}', space=vmem, size = 0x1000, scoped, tag = 'input window, operand 0, single buffered']
    #allocation3 [shape = 's32[1]{0}', space=sflag, size = 0x4, scoped, tag = 'scoped memory for tpu_custom_call.1']
    #allocation4 [shape = 's32[1]{0}', space=sflag, size = 0x4, scoped, tag = 'scoped memory for tpu_custom_call.1']
    #allocation5 [shape = 'u8[4096]{0}', space=vmem, size = 0x1000, scoped, tag = 'output window, operand 0, single buffered']
    %6 = vsyncpa [#allocation3], 0
    %7 = vsyncpa [#allocation4], 0
    // Predicated region
    $region2: #{tpu_custom_call.1} parent=1 // pred_check
      _
    $region3: #{tpu_custom_call.1} parent=1 // pred_check_branch
      %9 = sbr.rel (0) target = $region5
    $region4: #{tpu_custom_call.1} parent=1 // pred_region
      %11 = vsyncadd [#allocation3], 0
      %s13 = sshll.u32 %s0, 4
      %s14 = int_to_ptr.hbm [resolvable:$true] %s13
      %s15 = sshll.u32 [#allocation2], 4
      %s16 = int_to_ptr.vmem [resolvable:$true] %s15
      %18 = dma.hbm_to_vmem [thread:$0]  %s14, 128, %s16, [#allocation3]
    $region5: #{tpu_custom_call.1} parent=1 // pred_fallthru
      _
    // Predicated region
    $region6: #{tpu_custom_call.1} parent=1 // pred_check
      _
    $region7: #{tpu_custom_call.1} parent=1 // pred_check_branch
      %20 = sbr.rel (0) target = $region9
    $region8: #{tpu_custom_call.1} parent=1 // pred_region
      %22 = dma.done [#allocation3], 128
    $region9: #{tpu_custom_call.1} parent=1 // pred_fallthru
      _
    %v23 = vld [vmem:[#allocation2] sm:$0xff]
    %24 = vrot.lane.b32.xlu0 %v23, 1
    %v25 = vpop.permute.xlu0 %24
    %26 = vst [vmem:[#allocation5] sm:$0xff] %v25
    // Predicated region
    $region10: #{tpu_custom_call.1} parent=1 // pred_check
      _
    $region11: #{tpu_custom_call.1} parent=1 // pred_check_branch
      %28 = sbr.rel (0) target = $region13
    $region12: #{tpu_custom_call.1} parent=1 // pred_region
      %30 = vsyncadd [#allocation4], 0
      %s32 = sshll.u32 [#allocation5], 4
      %s33 = int_to_ptr.vmem [resolvable:$true] %s32
      %s34 = sshll.u32 %s1, 4
      %s35 = int_to_ptr.hbm [resolvable:$true] %s34
      %37 = dma.vmem_to_hbm [thread:$0]  %s33, 128, %s35, [#allocation4]
    $region13: #{tpu_custom_call.1} parent=1 // pred_fallthru
      _
    // Predicated region
    $region14: #{tpu_custom_call.1} parent=1 // pred_check
      _
    $region15: #{tpu_custom_call.1} parent=1 // pred_check_branch
      %39 = sbr.rel (0) target = $region17
    $region16: #{tpu_custom_call.1} parent=1 // pred_region
      %41 = dma.done [#allocation4], 128
    $region17: #{tpu_custom_call.1} parent=1 // pred_fallthru
      _
    %42 = vsyncpa [#allocation3], 1
    %43 = vsyncpa [#allocation4], 1

</llo_original>
